<compile_context>
chip_gen: v7x
topology: tpu7x:2x2x1
jax: 0.10.0
libtpu: 0.0.40
codegen_flags: <defaults>
</compile_context>

<pallas_src>
import functools
import numpy as np
import jax
import jax.numpy as jnp
from jax.experimental import pallas as pl
from jax.experimental.pallas import tpu as pltpu

LN_EPS = 1e-5  # torch.nn.LayerNorm default
_VMEM_LIMIT_BYTES = 64 * 1024 * 1024  # <= physical VMEM on v5e/v6e/v7x


def _cparams(dims):
    return pltpu.CompilerParams(dimension_semantics=dims,
                                vmem_limit_bytes=_VMEM_LIMIT_BYTES)


# ----------------------------- shared math helpers -----------------------------
def _gelu(x):
    # tanh-approximation GELU (EUP); TODO(synk): torch.nn.GELU uses exact erf (~1e-3 gap).
    return 0.5 * x * (1.0 + jnp.tanh(0.7978845608028654 * (x + 0.044715 * x * x * x)))


def _layernorm(x, g, b):
    mu = jnp.mean(x, axis=-1, keepdims=True)
    var = jnp.mean((x - mu) ** 2, axis=-1, keepdims=True)
    return (x - mu) * jax.lax.rsqrt(var + LN_EPS) * g + b


# ----------------------------- frontend kernel -----------------------------
def _frontend_kernel(len_ref, feat_ref, lnw_ref, lnb_ref, fpw_ref, fpb_ref,
                     convw_ref, convb_ref, out_ref, xpad_ref,
                     *, kernel_size, groups, tap_chunk):
    """FeatureProjection (LN -> Linear), x[mask]=0, grouped conv pos-embed + GELU + residual."""
    b = pl.program_id(0)
    length = len_ref[b]                                 # scalar from SMEM (prefetched)
    f = feat_ref[0]                                     # (T, Fin) f32
    seq = f.shape[0]
    d_model = out_ref.shape[-1]
    dg = d_model // groups
    pad = kernel_size // 2
    cdt = fpw_ref.dtype                                 # MXU input dtype (bf16 or f32)

    # feature_projection: LayerNorm -> Linear (dropout = identity)
    xn = _layernorm(f, lnw_ref[...], lnb_ref[...])
    x = jnp.dot(xn.astype(cdt), fpw_ref[...], preferred_element_type=jnp.float32) + fpb_ref[...]

    # x[mask] = 0.0 for padded rows; mask built in-kernel from lengths
    rid = jax.lax.broadcasted_iota(jnp.int32, (seq, 1), 0)
    x = jnp.where(rid < length, x, 0.0)

    # zero only the boundary rows of the padded scratch, then drop x into the middle
    if pad > 0:
        xpad_ref[:pad, :] = jnp.zeros((pad, d_model), xpad_ref.dtype)
        xpad_ref[pad + seq:, :] = jnp.zeros((pad, d_model), xpad_ref.dtype)
    xpad_ref[pad:pad + seq, :] = x

    # grouped Conv1d positional embedding: per-group, per-tap-chunk accumulation
    # (no (T, K*Dg) im2col slab is ever materialized in VMEM)
    group_outs = []
    for g in range(groups):
        cols = slice(g * dg, (g + 1) * dg)
        acc = jnp.zeros((seq, dg), jnp.float32)
        for k0 in range(0, kernel_size, tap_chunk):
            kw = min(tap_chunk, kernel_size - k0)
            xcol = jnp.concatenate(
                [xpad_ref[k0 + k:k0 + k + seq, cols] for k in range(kw)], axis=1)
            acc = acc + jnp.dot(xcol.astype(cdt),
                                convw_ref[g, k0 * dg:(k0 + kw) * dg, :],
                                preferred_element_type=jnp.float32)
        group_outs.append(acc)
    conv = jnp.concatenate(group_outs, axis=1) + convb_ref[...]
    out_ref[0] = x + _gelu(conv)                        # x = x + pos_conv_embed(x)


# ----------------------------- fused transformer kernel -----------------------------
def _layers_kernel(len_ref, x_ref,
                   wq_ref, bq_ref, wk_ref, bk_ref, wv_ref, bv_ref, wo_ref, bo_ref,
                   ln1w_ref, ln1b_ref, w1_ref, b1_ref, w2_ref, b2_ref,
                   ln2w_ref, ln2b_ref, flnw_ref, flnb_ref,
                   out_ref, oacc_ref, *, num_heads, head_dim, q_tile):
    """All post-norm encoder layers + final LN; the residual stream stays in VMEM across L."""
    b = pl.program_id(0)
    l = pl.program_id(1)
    num_layers = pl.num_programs(1)
    length = len_ref[b]
    cdt = wq_ref.dtype                                  # MXU input dtype (bf16 or f32)

    carry = out_ref.at[0]                               # (T, D) f32, revisited across the L axis

    # layer 0: seed the VMEM-resident residual stream from the frontend output
    @pl.when(l == 0)
    def _():
        carry[...] = x_ref[0]

    x = carry[...]                                      # snapshot of the pre-layer stream
    seq, d_model = x.shape

    # additive key-padding bias built in-kernel (no (B,T,T) tensor in HBM)
    kid = jax.lax.broadcasted_iota(jnp.int32, (1, seq), 1)
    kbias = jnp.where(kid >= length, -10000.0, 0.0).astype(jnp.float32)   # (1, T)

    # full-sequence K / V once per (batch, layer); reused by every query tile
    xc = x.astype(cdt)
    k = jnp.dot(xc, wk_ref[0], preferred_element_type=jnp.float32) + bk_ref[0]
    v = jnp.dot(xc, wv_ref[0], preferred_element_type=jnp.float32) + bv_ref[0]
    kc = k.astype(cdt)
    vc = v.astype(cdt)

    scale = head_dim ** -0.5
    n_qt = seq // q_tile
    is_last = l == num_layers - 1

    def qtile_body(qi, dummy):
        r = pl.ds(pl.multiple_of(qi * q_tile, q_tile), q_tile)
        # this tile's rows have not been overwritten yet (tiles processed in order),
        # so reading them from the carry still gives the pre-layer values.
        x_t = carry[r, :]                               # (TQ, D) f32

        # Q projection with the softmax scale folded in (TQ*D mults, not H*TQ*T)
        q = jnp.dot(x_t.astype(cdt), wq_ref[0], preferred_element_type=jnp.float32) + bq_ref[0]
        qc = (q * scale).astype(cdt)

        for h in range(num_heads):
            sl = slice(h * head_dim, (h + 1) * head_dim)
            s = jax.lax.dot_general(qc[:, sl], kc[:, sl], (((1,), (1,)), ((), ())),
                                    preferred_element_type=jnp.float32)   # (TQ, T)
            s = s + kbias
            p = jnp.exp(s - jnp.max(s, axis=-1, keepdims=True))           # f32 exp
            inv = pl.reciprocal(jnp.sum(p, axis=-1, keepdims=True), approx=True)
            pv = jnp.dot(p.astype(cdt), vc[:, sl], preferred_element_type=jnp.float32)
            # normalize AFTER P.V (rows of (TQ,hd)); write head into the cdt scratch
            oacc_ref[:, sl] = (inv * pv).astype(cdt)

        # single (TQ,D)x(D,D) output projection over the concatenated heads
        attn = jnp.dot(oacc_ref[...], wo_ref[0], preferred_element_type=jnp.float32) + bo_ref[0]

        # residual + LayerNorm 1, feed-forward, residual + LayerNorm 2 (all f32)
        x1 = _layernorm(x_t + attn, ln1w_ref[0], ln1b_ref[0])
        h1 = _gelu(jnp.dot(x1.astype(cdt), w1_ref[0],
                           preferred_element_type=jnp.float32) + b1_ref[0])
        ff = jnp.dot(h1.astype(cdt), w2_ref[0], preferred_element_type=jnp.float32) + b2_ref[0]
        x2 = _layernorm(x1 + ff, ln2w_ref[0], ln2b_ref[0])

        @pl.when(l < num_layers - 1)
        def _():
            carry[r, :] = x2

        @pl.when(is_last)
        def _():
            # fuse the transformer's final LayerNorm into the last layer iteration
            carry[r, :] = _layernorm(x2, flnw_ref[...], flnb_ref[...])

        return dummy

    jax.lax.fori_loop(0, n_qt, qtile_body, 0)


# ----------------------------- index maps -----------------------------
def _im_b3(b, lens):          # frontend: per-batch (1, T, C) block
    return (b, 0, 0)


def _im_f2(b, lens):          # frontend: full 2-D weight, resident across the grid
    return (0, 0)


def _im_f3(b, lens):          # frontend: full 3-D weight
    return (0, 0, 0)


def _im_bx(b, l, lens):       # layers: per-batch activation block, constant across L
    return (b, 0, 0)


def _im_layer(b, l, lens):    # layers: stacked per-layer weight, indexed by layer id
    return (l, 0, 0)


def _im_const2(b, l, lens):   # layers: final-LN params, constant across the grid
    return (0, 0)


# ----------------------------- pallas_call wrappers -----------------------------
def frontend_call(lengths, features, lnw, lnb, fpw, fpb, convw, convb, *, kernel_size, groups):
    B, T, Fin = features.shape
    D = fpw.shape[1]
    pad = kernel_size // 2
    tap_chunk = min(kernel_size, 8)
    kern = functools.partial(_frontend_kernel, kernel_size=kernel_size,
                             groups=groups, tap_chunk=tap_chunk)
    grid_spec = pltpu.PrefetchScalarGridSpec(
        num_scalar_prefetch=1,
        grid=(B,),
        in_specs=[
            pl.BlockSpec((1, T, Fin), _im_b3),
            pl.BlockSpec(lnw.shape, _im_f2),
            pl.BlockSpec(lnb.shape, _im_f2),
            pl.BlockSpec(fpw.shape, _im_f2),
            pl.BlockSpec(fpb.shape, _im_f2),
            pl.BlockSpec(convw.shape, _im_f3),
            pl.BlockSpec(convb.shape, _im_f2),
        ],
        out_specs=pl.BlockSpec((1, T, D), _im_b3),
        scratch_shapes=[pltpu.VMEM((T + 2 * pad, D), jnp.float32)],  # in-VMEM zero-padded x
    )
    return pl.pallas_call(
        kern,
        out_shape=jax.ShapeDtypeStruct((B, T, D), jnp.float32),
        grid_spec=grid_spec,
        compiler_params=_cparams(("parallel",)),
    )(lengths, features, lnw, lnb, fpw, fpb, convw, convb)


def encoder_layers_call(lengths, x, stacked, final_ln_w, final_ln_b,
                        *, num_heads, head_dim, num_layers, q_tile=None):
    B, T, D = x.shape
    if q_tile is None:
        q_tile = T if T <= 256 else 256
    assert T % q_tile == 0, "TODO(synk): ragged last query tile not handled"
    assert num_heads * head_dim == D

    order = ("wq", "bq", "wk", "bk", "wv", "bv", "wo", "bo",
             "ln1_w", "ln1_b", "w1", "b1", "w2", "b2", "ln2_w", "ln2_b")
    ws = [stacked[k] for k in order]
    kern = functools.partial(_layers_kernel, num_heads=num_heads,
                             head_dim=head_dim, q_tile=q_tile)
    grid_spec = pltpu.PrefetchScalarGridSpec(
        num_scalar_prefetch=1,
        grid=(B, num_layers),
        in_specs=[pl.BlockSpec((1, T, D), _im_bx)]
                 + [pl.BlockSpec((1,) + tuple(w.shape[1:]), _im_layer) for w in ws]
                 + [pl.BlockSpec(final_ln_w.shape, _im_const2),
                    pl.BlockSpec(final_ln_b.shape, _im_const2)],
        out_specs=pl.BlockSpec((1, T, D), _im_bx),
        scratch_shapes=[pltpu.VMEM((q_tile, D), ws[0].dtype)],   # per-tile head outputs
    )
    return pl.pallas_call(
        kern,
        out_shape=jax.ShapeDtypeStruct((B, T, D), jnp.float32),
        grid_spec=grid_spec,
        compiler_params=_cparams(("parallel", "arbitrary")),
    )(lengths, x, *ws, final_ln_w, final_ln_b)


# ----------------------------- Encoder forward (glue + kernels) -----------------------------
def stack_layer_params(layers):
    return {k: jnp.stack([lp[k] for lp in layers], axis=0) for k in layers[0].keys()}


def encoder_forward(features, lengths, params, *, num_heads, head_dim, kernel_size, groups):
    # frontend: feature projection + mask-zero + conv positional embedding + residual (fused)
    x = frontend_call(lengths, features,
                      params["fp_ln_w"], params["fp_ln_b"], params["fp_w"], params["fp_b"],
                      params["conv_wg"], params["conv_b"],
                      kernel_size=kernel_size, groups=groups)
    # all post-norm encoder layers + final LayerNorm: one fused pallas_call
    stacked = stack_layer_params(params["layers"])
    return encoder_layers_call(lengths, x, stacked,
                               params["final_ln_w"], params["final_ln_b"],
                               num_heads=num_heads, head_dim=head_dim,
                               num_layers=len(params["layers"]))


_MATMUL_KEYS_TOP = ("fp_w", "conv_wg")
_MATMUL_KEYS_LAYER = ("wq", "wk", "wv", "wo", "w1", "w2")


def cast_matmul_params(params, dtype):
    """Cast MXU weight operands to `dtype`; biases / LayerNorm params stay f32."""
    out = dict(params)
    for k in _MATMUL_KEYS_TOP:
        out[k] = params[k].astype(dtype)
    out["layers"] = [
        {k: (v.astype(dtype) if k in _MATMUL_KEYS_LAYER else v) for k, v in lp.items()}
        for lp in params["layers"]
    ]
    return out


# ----------------------------- pure-JAX reference (same math, f32) -----------------------------
def reference_forward(features, lengths, params, *, num_heads, head_dim, kernel_size, groups):
    B, T, _ = features.shape
    D = params["fp_w"].shape[1]
    dg = D // groups
    pad_mask = (jnp.arange(T)[None, :] >= lengths[:, None]).astype(jnp.float32)
    amask = (-10000.0 * pad_mask)[:, None, None, :]               # (B,1,1,T)

    x = _layernorm(features, params["fp_ln_w"], params["fp_ln_b"]) @ params["fp_w"] + params["fp_b"]
    x = x * (1.0 - pad_mask)[:, :, None]

    pad = kernel_size // 2
    xpad = jnp.pad(x, ((0, 0), (pad, pad), (0, 0)))
    cols = []
    for g in range(groups):
        xg = xpad[:, :, g * dg:(g + 1) * dg]
        xcol = jnp.concatenate([xg[:, k:k + T, :] for k in range(kernel_size)], axis=-1)
        cols.append(jnp.einsum("btc,cd->btd", xcol, params["conv_wg"][g]))
    conv = jnp.concatenate(cols, axis=-1) + params["conv_b"]
    x = x + _gelu(conv)

    scale = head_dim ** -0.5
    for lp in params["layers"]:
        q = x @ lp["wq"] + lp["bq"]
        k = x @ lp["wk"] + lp["bk"]
        v = x @ lp["wv"] + lp["bv"]
        qh = q.reshape(B, T, num_heads, head_dim)
        kh = k.reshape(B, T, num_heads, head_dim)
        vh = v.reshape(B, T, num_heads, head_dim)
        s = scale * jnp.einsum("bqhd,bkhd->bhqk", qh, kh) + amask
        w = jax.nn.softmax(s, axis=-1)
        o = jnp.einsum("bhqk,bkhd->bqhd", w, vh).reshape(B, T, D)
        attn = o @ lp["wo"] + lp["bo"]
        x = _layernorm(x + attn, lp["ln1_w"], lp["ln1_b"])
        ff = _gelu(x @ lp["w1"] + lp["b1"]) @ lp["w2"] + lp["b2"]
        x = _layernorm(x + ff, lp["ln2_w"], lp["ln2_b"])
    return _layernorm(x, params["final_ln_w"], params["final_ln_b"])


# ----------------------------- main -----------------------------
if __name__ == "__main__":
    B, T, FIN, D = 2, 8, 16, 32
    H, HD, FFN, K, GROUPS, NLAYERS = 4, 8, 64, 3, 2, 2

    keys = iter(jax.random.split(jax.random.PRNGKey(0), 64))

    def nrm(shape, scale=0.1):
        return scale * jax.random.normal(next(keys), shape, dtype=jnp.float32)

    def make_layer():
        return dict(
            wq=nrm((D, D), 0.15), bq=nrm((1, D), 0.05),
            wk=nrm((D, D), 0.15), bk=nrm((1, D), 0.05),
            wv=nrm((D, D), 0.15), bv=nrm((1, D), 0.05),
            wo=nrm((D, D), 0.15), bo=nrm((1, D), 0.05),
            ln1_w=1.0 + nrm((1, D)), ln1_b=nrm((1, D)),
            w1=nrm((D, FFN), 0.15), b1=nrm((1, FFN), 0.05),
            w2=nrm((FFN, D), 0.15), b2=nrm((1, D), 0.05),
            ln2_w=1.0 + nrm((1, D)), ln2_b=nrm((1, D)),
        )

    params = dict(
        fp_ln_w=1.0 + nrm((1, FIN)), fp_ln_b=nrm((1, FIN)),
        fp_w=nrm((FIN, D), 0.2), fp_b=nrm((1, D)),
        conv_b=nrm((1, D)),
        final_ln_w=1.0 + nrm((1, D)), final_ln_b=nrm((1, D)),
        layers=[make_layer() for _ in range(NLAYERS)],
    )

    # grouped Conv1d weight, torch layout (C_out=D, C_in/groups=Dg, K) ->
    # per-group im2col weights (G, K*Dg, Dg): w[g, k*Dg+ci, co_local]
    # TODO(synk): torchaudio's ConvolutionalPositionalEmbedding uses K=128 (even) with
    # weight_norm and num_remove=1; odd-K symmetric 'same' padding is assumed here.
    conv_w_torch = nrm((D, D // GROUPS, K), 0.2)
    dg = D // GROUPS
    cw = np.asarray(conv_w_torch)
    conv_wg = np.zeros((GROUPS, K * dg, dg), np.float32)
    for g in range(GROUPS):
        for co in range(dg):
            for k in range(K):
                conv_wg[g, k * dg:(k + 1) * dg, co] = cw[g * dg + co, :, k]
    params["conv_wg"] = jnp.asarray(conv_wg)

    features = 0.5 * jax.random.normal(next(keys), (B, T, FIN), dtype=jnp.float32)
    lengths = jnp.array([8, 5], dtype=jnp.int32)

    ref = reference_forward(features, lengths, params, num_heads=H, head_dim=HD,
                            kernel_size=K, groups=GROUPS)

    # f32 MXU inputs: tight numerical check of the kernel math
    out_f32 = jax.block_until_ready(
        encoder_forward(features, lengths, params, num_heads=H, head_dim=HD,
                        kernel_size=K, groups=GROUPS))
    assert out_f32.shape == (B, T, D), out_f32.shape
    err_f32 = float(jnp.max(jnp.abs(out_f32 - ref)))
    assert err_f32 < 5e-3, f"f32 max abs err {err_f32}"

    # bf16 MXU inputs (f32 accumulation / softmax / LayerNorm): the fast production path
    params_bf16 = cast_matmul_params(params, jnp.bfloat16)
    out_bf16 = jax.block_until_ready(
        encoder_forward(features, lengths, params_bf16, num_heads=H, head_dim=HD,
                        kernel_size=K, groups=GROUPS))
    err_bf16 = float(jnp.max(jnp.abs(out_bf16 - ref)))
    assert err_bf16 < 6e-2, f"bf16 max abs err {err_bf16}"

    print("KERNEL_OK")
</pallas_src>

<mosaic_0001>
module attributes {stable_mosaic.version = 11 : i64} {
  func.func @_frontend_kernel(%arg0: i32, %arg1: memref<2xi32, #tpu.memory_space<smem>>, %arg2: memref<1x8x16xf32, #tpu.memory_space<vmem>>, %arg3: memref<1x16xf32, #tpu.memory_space<vmem>>, %arg4: memref<1x16xf32, #tpu.memory_space<vmem>>, %arg5: memref<16x32xf32, #tpu.memory_space<vmem>>, %arg6: memref<1x32xf32, #tpu.memory_space<vmem>>, %arg7: memref<2x48x16xf32, #tpu.memory_space<vmem>>, %arg8: memref<1x32xf32, #tpu.memory_space<vmem>>, %arg9: memref<1x8x32xf32, #tpu.memory_space<vmem>>, %arg10: memref<10x32xf32, #tpu.memory_space<vmem>>) attributes {dimension_semantics = [#tpu.dimension_semantics<parallel>], iteration_bounds = array<i64: 2>, scalar_prefetch = 1 : i64, scratch_operands = 1 : i64, tpu.core_type = #tpu.core_type<tc>, window_params = [{transform_indices = @transform_0, window_bounds = array<i64: 1, 8, 16>}, {pipeline_mode = #tpu.pipeline_mode<synchronous>, transform_indices = @transform_1, window_bounds = array<i64: 1, 16>}, {pipeline_mode = #tpu.pipeline_mode<synchronous>, transform_indices = @transform_2, window_bounds = array<i64: 1, 16>}, {pipeline_mode = #tpu.pipeline_mode<synchronous>, transform_indices = @transform_3, window_bounds = array<i64: 16, 32>}, {pipeline_mode = #tpu.pipeline_mode<synchronous>, transform_indices = @transform_4, window_bounds = array<i64: 1, 32>}, {pipeline_mode = #tpu.pipeline_mode<synchronous>, transform_indices = @transform_5, window_bounds = array<i64: 2, 48, 16>}, {pipeline_mode = #tpu.pipeline_mode<synchronous>, transform_indices = @transform_6, window_bounds = array<i64: 1, 32>}, {transform_indices = @transform_7, window_bounds = array<i64: 1, 8, 32>}]} {
    %0 = arith.index_cast %arg0 : i32 to index
    %1 = memref.load %arg1[%0] : memref<2xi32, #tpu.memory_space<smem>>
    %c0 = arith.constant 0 : index
    %c0_0 = arith.constant 0 : index
    %c0_1 = arith.constant 0 : index
    %2 = vector.load %arg2[%c0, %c0_0, %c0_1] : memref<1x8x16xf32, #tpu.memory_space<vmem>>, vector<1x8x16xf32>
    %3 = vector.shape_cast %2 : vector<1x8x16xf32> to vector<8x16xf32>
    %c0_2 = arith.constant 0 : index
    %c0_3 = arith.constant 0 : index
    %4 = vector.load %arg3[%c0_2, %c0_3] : memref<1x16xf32, #tpu.memory_space<vmem>>, vector<1x16xf32>
    %c0_4 = arith.constant 0 : index
    %c0_5 = arith.constant 0 : index
    %5 = vector.load %arg4[%c0_4, %c0_5] : memref<1x16xf32, #tpu.memory_space<vmem>>, vector<1x16xf32>
    %cst = arith.constant dense<0.000000e+00> : vector<8xf32>
    %6 = vector.multi_reduction <add>, %3, %cst [1] : vector<8x16xf32> to vector<8xf32>
    %7 = vector.shape_cast %6 : vector<8xf32> to vector<8x1xf32>
    %cst_6 = arith.constant 1.600000e+01 : f32
    %8 = vector.broadcast %cst_6 : f32 to vector<8x1xf32>
    %9 = arith.divf %7, %8 : vector<8x1xf32>
    %10 = vector.broadcast %9 : vector<8x1xf32> to vector<8x16xf32>
    %11 = arith.subf %3, %10 : vector<8x16xf32>
    %12 = arith.mulf %11, %11 : vector<8x16xf32>
    %cst_7 = arith.constant dense<0.000000e+00> : vector<8xf32>
    %13 = vector.multi_reduction <add>, %12, %cst_7 [1] : vector<8x16xf32> to vector<8xf32>
    %14 = vector.shape_cast %13 : vector<8xf32> to vector<8x1xf32>
    %cst_8 = arith.constant 1.600000e+01 : f32
    %15 = vector.broadcast %cst_8 : f32 to vector<8x1xf32>
    %16 = arith.divf %14, %15 : vector<8x1xf32>
    %17 = vector.broadcast %9 : vector<8x1xf32> to vector<8x16xf32>
    %18 = arith.subf %3, %17 : vector<8x16xf32>
    %cst_9 = arith.constant 9.99999974E-6 : f32
    %19 = vector.broadcast %cst_9 : f32 to vector<8x1xf32>
    %20 = arith.addf %16, %19 : vector<8x1xf32>
    %21 = math.rsqrt %20 : vector<8x1xf32>
    %22 = vector.broadcast %21 : vector<8x1xf32> to vector<8x16xf32>
    %23 = arith.mulf %18, %22 : vector<8x16xf32>
    %24 = vector.broadcast %4 : vector<1x16xf32> to vector<8x16xf32>
    %25 = arith.mulf %23, %24 : vector<8x16xf32>
    %26 = vector.broadcast %5 : vector<1x16xf32> to vector<8x16xf32>
    %27 = arith.addf %25, %26 : vector<8x16xf32>
    %c0_10 = arith.constant 0 : index
    %c0_11 = arith.constant 0 : index
    %28 = vector.load %arg5[%c0_10, %c0_11] : memref<16x32xf32, #tpu.memory_space<vmem>>, vector<16x32xf32>
    %cst_12 = arith.constant dense<0.000000e+00> : vector<8x32xf32>
    %29 = tpu.matmul %27, %28, %cst_12 {dimension_numbers = #tpu.dot_dimension_numbers<[1], [0], [0], [1], [0, 0, 1, 1], [], []>} : vector<8x16xf32>, vector<16x32xf32>, vector<8x32xf32> -> vector<8x32xf32>
    %c0_13 = arith.constant 0 : index
    %c0_14 = arith.constant 0 : index
    %30 = vector.load %arg6[%c0_13, %c0_14] : memref<1x32xf32, #tpu.memory_space<vmem>>, vector<1x32xf32>
    %31 = vector.broadcast %30 : vector<1x32xf32> to vector<8x32xf32>
    %32 = arith.addf %29, %31 : vector<8x32xf32>
    %33 = tpu.iota {dimensions = array<i32: 0>} : vector<8x1xi32>
    %34 = vector.broadcast %1 : i32 to vector<8x1xi32>
    %35 = arith.cmpi slt, %33, %34 : vector<8x1xi32>
    %cst_15 = arith.constant 0.000000e+00 : f32
    %36 = vector.shape_cast %35 : vector<8x1xi1> to vector<8x1xi1>
    %37 = vector.broadcast %36 : vector<8x1xi1> to vector<8x32xi1>
    %38 = vector.broadcast %cst_15 : f32 to vector<8x32xf32>
    %39 = arith.select %37, %32, %38 : vector<8x32xi1>, vector<8x32xf32>
    %cst_16 = arith.constant 0.000000e+00 : f32
    %40 = vector.broadcast %cst_16 : f32 to vector<1x32xf32>
    %c0_17 = arith.constant 0 : index
    %c0_18 = arith.constant 0 : index
    %41 = vector.load %arg10[%c0_17, %c0_18] : memref<10x32xf32, #tpu.memory_space<vmem>>, vector<1x32xf32>
    tpu.vector_store %arg10[%c0_17, %c0_18], %40 {strides = array<i32>} : memref<10x32xf32, #tpu.memory_space<vmem>>, vector<1x32xf32>,
    %cst_19 = arith.constant 0.000000e+00 : f32
    %42 = vector.broadcast %cst_19 : f32 to vector<1x32xf32>
    %c9 = arith.constant 9 : index
    %c0_20 = arith.constant 0 : index
    %43 = vector.load %arg10[%c9, %c0_20] : memref<10x32xf32, #tpu.memory_space<vmem>>, vector<1x32xf32>
    tpu.vector_store %arg10[%c9, %c0_20], %42 {strides = array<i32>} : memref<10x32xf32, #tpu.memory_space<vmem>>, vector<1x32xf32>,
    %c1 = arith.constant 1 : index
    %c0_21 = arith.constant 0 : index
    %44 = vector.load %arg10[%c1, %c0_21] : memref<10x32xf32, #tpu.memory_space<vmem>>, vector<8x32xf32>
    tpu.vector_store %arg10[%c1, %c0_21], %39 {strides = array<i32>} : memref<10x32xf32, #tpu.memory_space<vmem>>, vector<8x32xf32>,
    %cst_22 = arith.constant 0.000000e+00 : f32
    %45 = vector.broadcast %cst_22 : f32 to vector<8x16xf32>
    %c0_23 = arith.constant 0 : index
    %c0_24 = arith.constant 0 : index
    %46 = vector.load %arg10[%c0_23, %c0_24] : memref<10x32xf32, #tpu.memory_space<vmem>>, vector<8x16xf32>
    %c1_25 = arith.constant 1 : index
    %c0_26 = arith.constant 0 : index
    %47 = vector.load %arg10[%c1_25, %c0_26] : memref<10x32xf32, #tpu.memory_space<vmem>>, vector<8x16xf32>
    %c2 = arith.constant 2 : index
    %c0_27 = arith.constant 0 : index
    %48 = vector.load %arg10[%c2, %c0_27] : memref<10x32xf32, #tpu.memory_space<vmem>>, vector<8x16xf32>
    %49 = tpu.concatenate %46, %47, %48 in 1 : vector<8x16xf32>, vector<8x16xf32>, vector<8x16xf32> -> vector<8x48xf32>
    %c0_28 = arith.constant 0 : index
    %c0_29 = arith.constant 0 : index
    %c0_30 = arith.constant 0 : index
    %50 = vector.load %arg7[%c0_28, %c0_29, %c0_30] : memref<2x48x16xf32, #tpu.memory_space<vmem>>, vector<1x48x16xf32>
    %51 = vector.shape_cast %50 : vector<1x48x16xf32> to vector<48x16xf32>
    %cst_31 = arith.constant dense<0.000000e+00> : vector<8x16xf32>
    %52 = tpu.matmul %49, %51, %cst_31 {dimension_numbers = #tpu.dot_dimension_numbers<[1], [0], [0], [1], [0, 0, 1, 1], [], []>} : vector<8x48xf32>, vector<48x16xf32>, vector<8x16xf32> -> vector<8x16xf32>
    %53 = arith.addf %45, %52 : vector<8x16xf32>
    %cst_32 = arith.constant 0.000000e+00 : f32
    %54 = vector.broadcast %cst_32 : f32 to vector<8x16xf32>
    %c0_33 = arith.constant 0 : index
    %c16 = arith.constant 16 : index
    %55 = vector.load %arg10[%c0_33, %c16] : memref<10x32xf32, #tpu.memory_space<vmem>>, vector<8x16xf32>
    %c1_34 = arith.constant 1 : index
    %c16_35 = arith.constant 16 : index
    %56 = vector.load %arg10[%c1_34, %c16_35] : memref<10x32xf32, #tpu.memory_space<vmem>>, vector<8x16xf32>
    %c2_36 = arith.constant 2 : index
    %c16_37 = arith.constant 16 : index
    %57 = vector.load %arg10[%c2_36, %c16_37] : memref<10x32xf32, #tpu.memory_space<vmem>>, vector<8x16xf32>
    %58 = tpu.concatenate %55, %56, %57 in 1 : vector<8x16xf32>, vector<8x16xf32>, vector<8x16xf32> -> vector<8x48xf32>
    %c1_38 = arith.constant 1 : index
    %c0_39 = arith.constant 0 : index
    %c0_40 = arith.constant 0 : index
    %59 = vector.load %arg7[%c1_38, %c0_39, %c0_40] : memref<2x48x16xf32, #tpu.memory_space<vmem>>, vector<1x48x16xf32>
    %60 = vector.shape_cast %59 : vector<1x48x16xf32> to vector<48x16xf32>
    %cst_41 = arith.constant dense<0.000000e+00> : vector<8x16xf32>
    %61 = tpu.matmul %58, %60, %cst_41 {dimension_numbers = #tpu.dot_dimension_numbers<[1], [0], [0], [1], [0, 0, 1, 1], [], []>} : vector<8x48xf32>, vector<48x16xf32>, vector<8x16xf32> -> vector<8x16xf32>
    %62 = arith.addf %54, %61 : vector<8x16xf32>
    %63 = tpu.concatenate %53, %62 in 1 : vector<8x16xf32>, vector<8x16xf32> -> vector<8x32xf32>
    %c0_42 = arith.constant 0 : index
    %c0_43 = arith.constant 0 : index
    %64 = vector.load %arg8[%c0_42, %c0_43] : memref<1x32xf32, #tpu.memory_space<vmem>>, vector<1x32xf32>
    %65 = vector.broadcast %64 : vector<1x32xf32> to vector<8x32xf32>
    %66 = arith.addf %63, %65 : vector<8x32xf32>
    %cst_44 = arith.constant 5.000000e-01 : f32
    %67 = vector.broadcast %cst_44 : f32 to vector<8x32xf32>
    %68 = arith.mulf %67, %66 : vector<8x32xf32>
    %cst_45 = arith.constant 4.471500e-02 : f32
    %69 = vector.broadcast %cst_45 : f32 to vector<8x32xf32>
    %70 = arith.mulf %69, %66 : vector<8x32xf32>
    %71 = arith.mulf %70, %66 : vector<8x32xf32>
    %72 = arith.mulf %71, %66 : vector<8x32xf32>
    %73 = arith.addf %66, %72 : vector<8x32xf32>
    %cst_46 = arith.constant 0.797884583 : f32
    %74 = vector.broadcast %cst_46 : f32 to vector<8x32xf32>
    %75 = arith.mulf %74, %73 : vector<8x32xf32>
    %76 = math.tanh %75 : vector<8x32xf32>
    %cst_47 = arith.constant 1.000000e+00 : f32
    %77 = vector.broadcast %cst_47 : f32 to vector<8x32xf32>
    %78 = arith.addf %77, %76 : vector<8x32xf32>
    %79 = arith.mulf %68, %78 : vector<8x32xf32>
    %80 = arith.addf %39, %79 : vector<8x32xf32>
    %c0_48 = arith.constant 0 : index
    %c0_49 = arith.constant 0 : index
    %c0_50 = arith.constant 0 : index
    %81 = vector.load %arg9[%c0_48, %c0_49, %c0_50] : memref<1x8x32xf32, #tpu.memory_space<vmem>>, vector<1x8x32xf32>
    %82 = vector.shape_cast %81 : vector<1x8x32xf32> to vector<8x32xf32>
    %83 = vector.shape_cast %80 : vector<8x32xf32> to vector<1x8x32xf32>
    tpu.vector_store %arg9[%c0_48, %c0_49, %c0_50], %83 {strides = array<i32>} : memref<1x8x32xf32, #tpu.memory_space<vmem>>, vector<1x8x32xf32>,
    return
  }
  func.func @transform_0(%arg0: i32, %arg1: memref<2xi32, #tpu.memory_space<smem>>) -> (i32, i32, i32) {
    %c0_i32 = arith.constant 0 : i32
    %c0_i32_0 = arith.constant 0 : i32
    %c0_i32_1 = arith.constant 0 : i32
    return %arg0, %c0_i32, %c0_i32_0 : i32, i32, i32
  }
  func.func @transform_1(%arg0: i32, %arg1: memref<2xi32, #tpu.memory_space<smem>>) -> (i32, i32) {
    %c0_i32 = arith.constant 0 : i32
    %c0_i32_0 = arith.constant 0 : i32
    %c0_i32_1 = arith.constant 0 : i32
    return %c0_i32, %c0_i32_0 : i32, i32
  }
  func.func @transform_2(%arg0: i32, %arg1: memref<2xi32, #tpu.memory_space<smem>>) -> (i32, i32) {
    %c0_i32 = arith.constant 0 : i32
    %c0_i32_0 = arith.constant 0 : i32
    %c0_i32_1 = arith.constant 0 : i32
    return %c0_i32, %c0_i32_0 : i32, i32
  }
  func.func @transform_3(%arg0: i32, %arg1: memref<2xi32, #tpu.memory_space<smem>>) -> (i32, i32) {
    %c0_i32 = arith.constant 0 : i32
    %c0_i32_0 = arith.constant 0 : i32
    %c0_i32_1 = arith.constant 0 : i32
    return %c0_i32, %c0_i32_0 : i32, i32
  }
  func.func @transform_4(%arg0: i32, %arg1: memref<2xi32, #tpu.memory_space<smem>>) -> (i32, i32) {
    %c0_i32 = arith.constant 0 : i32
    %c0_i32_0 = arith.constant 0 : i32
    %c0_i32_1 = arith.constant 0 : i32
    return %c0_i32, %c0_i32_0 : i32, i32
  }
  func.func @transform_5(%arg0: i32, %arg1: memref<2xi32, #tpu.memory_space<smem>>) -> (i32, i32, i32) {
    %c0_i32 = arith.constant 0 : i32
    %c0_i32_0 = arith.constant 0 : i32
    %c0_i32_1 = arith.constant 0 : i32
    %c0_i32_2 = arith.constant 0 : i32
    return %c0_i32, %c0_i32_0, %c0_i32_1 : i32, i32, i32
  }
  func.func @transform_6(%arg0: i32, %arg1: memref<2xi32, #tpu.memory_space<smem>>) -> (i32, i32) {
    %c0_i32 = arith.constant 0 : i32
    %c0_i32_0 = arith.constant 0 : i32
    %c0_i32_1 = arith.constant 0 : i32
    return %c0_i32, %c0_i32_0 : i32, i32
  }
  func.func @transform_7(%arg0: i32, %arg1: memref<2xi32, #tpu.memory_space<smem>>) -> (i32, i32, i32) {
    %c0_i32 = arith.constant 0 : i32
    %c0_i32_0 = arith.constant 0 : i32
    %c0_i32_1 = arith.constant 0 : i32
    return %arg0, %c0_i32, %c0_i32_0 : i32, i32, i32
  }
}

</mosaic_0001>

<llo_original>
// kernel: tpu_custom_call.1
$region0: #{tpu_custom_call.1}
  #allocation0 [shape = 'u32[]', space=smem, size = 0x4, offset = 0x4, fixed_abs, tag = 'smem constant byte address 0x4 - core index']
  #allocation1 [shape = 'u32[144,128]{1,0:T(1,128)}', space=vmem, size = 0x12000, scoped, tag = 'internal scratch']
  #allocation2 [shape = 'f32[10,32]{1,0:T(8,128)}', space=vmem, size = 0x2000, scoped, tag = 'scratch operand']
  #allocation3 [shape = 's32[1]{0}', space=sflag, size = 0x4, scoped, tag = 'scoped memory for tpu_custom_call.1']
  #allocation4 [shape = 'u8[512]{0}', space=smem, size = 0x200, scoped, tag = 'prefetched SMEM operand 0']
  %s0 = inlined_call_operand.hbm [shape: s32[2], index: 0, kind: input, shape index: {}]
  %s1 = inlined_call_operand.hbm [shape: f32[2,8,16], index: 1, kind: input, shape index: {}]
  %s2 = inlined_call_operand.hbm [shape: f32[1,16], index: 2, kind: input, shape index: {}]
  %s3 = inlined_call_operand.hbm [shape: f32[1,16], index: 3, kind: input, shape index: {}]
  %s4 = inlined_call_operand.hbm [shape: f32[16,32], index: 4, kind: input, shape index: {}]
  %s5 = inlined_call_operand.hbm [shape: f32[1,32], index: 5, kind: input, shape index: {}]
  %s6 = inlined_call_operand.hbm [shape: f32[2,48,16], index: 6, kind: input, shape index: {}]
  %s7 = inlined_call_operand.hbm [shape: f32[1,32], index: 7, kind: input, shape index: {}]
  %s8 = inlined_call_operand.hbm [shape: f32[2,8,32], index: 8, kind: output, shape index: {}]
  %s9 = sld [smem:[#allocation0]]
  $region89: #{tpu_custom_call.1} parent=0
    _
  %s11 = ssub.s32 1, %s9
  %s12 = scalar_select 0, %s11, %s9
  %14 = dma.hbm_to_smem %s0, 16, [#allocation4], [#allocation3]
  %15 = dma.done [#allocation3], 16
  %16 = sfence
  $region1: #{tpu_custom_call.1} parent=0
    #allocation5 [shape = 'u8[8192]{0}', space=vmem, size = 0x2000, scoped, tag = 'input window, operand 1']
    #allocation6 [shape = 's32[2]{0}', space=sflag, size = 0x8, scoped, tag = 'scoped memory for tpu_custom_call.1']
    #allocation7 [shape = 's32[2]{0}', space=sflag, size = 0x8, scoped, tag = 'scoped memory for tpu_custom_call.1']
    #allocation8 [shape = 'u8[512]{0}', space=vmem, size = 0x400, scoped, tag = 'input window, operand 2, single buffered']
    #allocation9 [shape = 's32[1]{0}', space=sflag, size = 0x4, scoped, tag = 'scoped memory for tpu_custom_call.1']
    #allocation10 [shape = 'u8[512]{0}', space=vmem, size = 0x400, scoped, tag = 'input window, operand 3, single buffered']
    #allocation11 [shape = 'u8[8192]{0}', space=vmem, size = 0x2000, scoped, tag = 'input window, operand 4, single buffered']
    #allocation12 [shape = 's32[1]{0}', space=sflag, size = 0x4, scoped, tag = 'scoped memory for tpu_custom_call.1']
    #allocation13 [shape = 'u8[512]{0}', space=vmem, size = 0x400, scoped, tag = 'input window, operand 5, single buffered']
    #allocation14 [shape = 'u8[49152]{0}', space=vmem, size = 0xc000, scoped, tag = 'input window, operand 6, single buffered']
    #allocation15 [shape = 's32[1]{0}', space=sflag, size = 0x4, scoped, tag = 'scoped memory for tpu_custom_call.1']
    #allocation16 [shape = 'u8[512]{0}', space=vmem, size = 0x400, scoped, tag = 'input window, operand 7, single buffered']
    #allocation17 [shape = 'u8[8192]{0}', space=vmem, size = 0x2000, scoped, tag = 'output window, operand 0']
    %17 = vsyncpa [#allocation6], 0
    %s18 = scalar_lea.sflag [#allocation6], 1
    %19 = vsyncpa %s18, 0
    %20 = vsyncpa [#allocation9], 0
    %21 = vsyncpa [#allocation12], 0
    %22 = vsyncpa [#allocation15], 0
    %23 = vsyncpa [#allocation7], 0
    %s24 = scalar_lea.sflag [#allocation7], 1
    %25 = vsyncpa %s24, 0
    loop: start=0, step=1, limit=4
    $region2: #{tpu_custom_call.1} parent=1 // loop_pre_header
      _
    $region3: #{tpu_custom_call.1} parent=1 // loop_header
      %s27 = sphi 0, %s31
      %p28 = scmp.ge.s32.totalorder %s27, 4
      %s37 = sphi 0, %s39
      %s40 = sphi 0, %s37
      %s41 = sphi 0, %s40
      %s57 = sphi 0, %s41
      %s61 = sphi 0, %s61
      %s63 = sphi 0, %s61
      %s64 = sphi 0, %s63
      %s78 = sphi 0, %s64
      %s82 = sphi 0, %s82
      %s84 = sphi 0, %s82
      %s85 = sphi 0, %s84
      %s99 = sphi 0, %s85
      %s103 = sphi 0, %s103
      %s105 = sphi 0, %s103
      %s106 = sphi 0, %s105
      %s120 = sphi 0, %s106
      %s124 = sphi 0, %s124
      %s126 = sphi 0, %s124
      %s127 = sphi 0, %s126
      %s141 = sphi 0, %s127
      %s145 = sphi 0, %s145
      %s147 = sphi 0, %s145
      %s148 = sphi 0, %s147
      %s162 = sphi 0, %s148
      %s166 = sphi 0, %s166
      %s168 = sphi 0, %s166
      %s169 = sphi 0, %s168
      %s183 = sphi 0, %s169
      %s189 = sphi 0, %s191
      %s192 = sphi 0, %s189
      %s193 = sphi 0, %s192
      %s209 = sphi 0, %s193
    $region4: #{tpu_custom_call.1} parent=1 // loop_header_branch
      %30 = sbr.rel (%p28) target = $region8
    $region5: #{tpu_custom_call.1} parent=1 // loop_body
      %s32 = ssub.s32 %s27, 1
      %s33 = ssub.s32 %s27, 2
      %s34 = sadd.s32 %s27, 1
      %s35 = ssub.s32 %s27, %s34
      %p36 = scmp.eq.s32.totalorder %s35, 0
      %s38 = sadd.s32 %s37, 1
      %s39 = scalar_select %p36, %s37, %s38
      %p42 = pneg %p36
      %p43 = scmp.eq.s32.totalorder %s27, 1
      %p44 = por %p42, %p43
      %p45 = scmp.ne.s32.totalorder %s37, %s40
      %p46 = scmp.eq.s32.totalorder %s27, 0
      %p47 = por %p45, %p46
      %p48 = scmp.ne.s32.totalorder %s37, %s40
      %p49 = scmp.eq.s32.totalorder %s32, 1
      %p50 = por %p48, %p49
      %p51 = scmp.ne.s32.totalorder %s40, %s41
      %p52 = scmp.eq.s32.totalorder %s32, 0
      %p53 = por %p51, %p52
      %p54 = scmp.ne.s32.totalorder %s40, %s41
      %p55 = scmp.eq.s32.totalorder %s33, 1
      %p56 = por %p54, %p55
      %p58 = scmp.ne.s32.totalorder %s41, %s57
      %p59 = scmp.eq.s32.totalorder %s33, 0
      %p60 = por %p58, %p59
      %s62 = sadd.s32 %s61, 1
      %p65 = scmp.eq.s32.totalorder %s27, 1
      %p66 = scmp.ne.s32.totalorder %s61, %s63
      %p67 = scmp.eq.s32.totalorder %s27, 0
      %p68 = por %p66, %p67
      %p69 = scmp.ne.s32.totalorder %s61, %s63
      %p70 = scmp.eq.s32.totalorder %s32, 1
      %p71 = por %p69, %p70
      %p72 = scmp.ne.s32.totalorder %s63, %s64
      %p73 = scmp.eq.s32.totalorder %s32, 0
      %p74 = por %p72, %p73
      %p75 = scmp.ne.s32.totalorder %s63, %s64
      %p76 = scmp.eq.s32.totalorder %s33, 1
      %p77 = por %p75, %p76
      %p79 = scmp.ne.s32.totalorder %s64, %s78
      %p80 = scmp.eq.s32.totalorder %s33, 0
      %p81 = por %p79, %p80
      %s83 = sadd.s32 %s82, 1
      %p86 = scmp.eq.s32.totalorder %s27, 1
      %p87 = scmp.ne.s32.totalorder %s82, %s84
      %p88 = scmp.eq.s32.totalorder %s27, 0
      %p89 = por %p87, %p88
      %p90 = scmp.ne.s32.totalorder %s82, %s84
      %p91 = scmp.eq.s32.totalorder %s32, 1
      %p92 = por %p90, %p91
      %p93 = scmp.ne.s32.totalorder %s84, %s85
      %p94 = scmp.eq.s32.totalorder %s32, 0
      %p95 = por %p93, %p94
      %p96 = scmp.ne.s32.totalorder %s84, %s85
      %p97 = scmp.eq.s32.totalorder %s33, 1
      %p98 = por %p96, %p97
      %p100 = scmp.ne.s32.totalorder %s85, %s99
      %p101 = scmp.eq.s32.totalorder %s33, 0
      %p102 = por %p100, %p101
      %s104 = sadd.s32 %s103, 1
      %p107 = scmp.eq.s32.totalorder %s27, 1
      %p108 = scmp.ne.s32.totalorder %s103, %s105
      %p109 = scmp.eq.s32.totalorder %s27, 0
      %p110 = por %p108, %p109
      %p111 = scmp.ne.s32.totalorder %s103, %s105
      %p112 = scmp.eq.s32.totalorder %s32, 1
      %p113 = por %p111, %p112
      %p114 = scmp.ne.s32.totalorder %s105, %s106
      %p115 = scmp.eq.s32.totalorder %s32, 0
      %p116 = por %p114, %p115
      %p117 = scmp.ne.s32.totalorder %s105, %s106
      %p118 = scmp.eq.s32.totalorder %s33, 1
      %p119 = por %p117, %p118
      %p121 = scmp.ne.s32.totalorder %s106, %s120
      %p122 = scmp.eq.s32.totalorder %s33, 0
      %p123 = por %p121, %p122
      %s125 = sadd.s32 %s124, 1
      %p128 = scmp.eq.s32.totalorder %s27, 1
      %p129 = scmp.ne.s32.totalorder %s124, %s126
      %p130 = scmp.eq.s32.totalorder %s27, 0
      %p131 = por %p129, %p130
      %p132 = scmp.ne.s32.totalorder %s124, %s126
      %p133 = scmp.eq.s32.totalorder %s32, 1
      %p134 = por %p132, %p133
      %p135 = scmp.ne.s32.totalorder %s126, %s127
      %p136 = scmp.eq.s32.totalorder %s32, 0
      %p137 = por %p135, %p136
      %p138 = scmp.ne.s32.totalorder %s126, %s127
      %p139 = scmp.eq.s32.totalorder %s33, 1
      %p140 = por %p138, %p139
      %p142 = scmp.ne.s32.totalorder %s127, %s141
      %p143 = scmp.eq.s32.totalorder %s33, 0
      %p144 = por %p142, %p143
      %s146 = sadd.s32 %s145, 1
      %p149 = scmp.eq.s32.totalorder %s27, 1
      %p150 = scmp.ne.s32.totalorder %s145, %s147
      %p151 = scmp.eq.s32.totalorder %s27, 0
      %p152 = por %p150, %p151
      %p153 = scmp.ne.s32.totalorder %s145, %s147
      %p154 = scmp.eq.s32.totalorder %s32, 1
      %p155 = por %p153, %p154
      %p156 = scmp.ne.s32.totalorder %s147, %s148
      %p157 = scmp.eq.s32.totalorder %s32, 0
      %p158 = por %p156, %p157
      %p159 = scmp.ne.s32.totalorder %s147, %s148
      %p160 = scmp.eq.s32.totalorder %s33, 1
      %p161 = por %p159, %p160
      %p163 = scmp.ne.s32.totalorder %s148, %s162
      %p164 = scmp.eq.s32.totalorder %s33, 0
      %p165 = por %p163, %p164
      %s167 = sadd.s32 %s166, 1
      %p170 = scmp.eq.s32.totalorder %s27, 1
      %p171 = scmp.ne.s32.totalorder %s166, %s168
      %p172 = scmp.eq.s32.totalorder %s27, 0
      %p173 = por %p171, %p172
      %p174 = scmp.ne.s32.totalorder %s166, %s168
      %p175 = scmp.eq.s32.totalorder %s32, 1
      %p176 = por %p174, %p175
      %p177 = scmp.ne.s32.totalorder %s168, %s169
      %p178 = scmp.eq.s32.totalorder %s32, 0
      %p179 = por %p177, %p178
      %p180 = scmp.ne.s32.totalorder %s168, %s169
      %p181 = scmp.eq.s32.totalorder %s33, 1
      %p182 = por %p180, %p181
      %p184 = scmp.ne.s32.totalorder %s169, %s183
      %p185 = scmp.eq.s32.totalorder %s33, 0
      %p186 = por %p184, %p185
      %s187 = ssub.s32 %s27, %s34
      %p188 = scmp.eq.s32.totalorder %s187, 0
      %s190 = sadd.s32 %s189, 1
      %s191 = scalar_select %p188, %s189, %s190
      %p194 = pneg %p188
      %p195 = scmp.eq.s32.totalorder %s27, 1
      %p196 = por %p194, %p195
      %p197 = scmp.ne.s32.totalorder %s189, %s192
      %p198 = scmp.eq.s32.totalorder %s27, 0
      %p199 = por %p197, %p198
      %p200 = scmp.ne.s32.totalorder %s189, %s192
      %p201 = scmp.eq.s32.totalorder %s32, 1
      %p202 = por %p200, %p201
      %p203 = scmp.ne.s32.totalorder %s192, %s193
      %p204 = scmp.eq.s32.totalorder %s32, 0
      %p205 = por %p203, %p204
      %p206 = scmp.ne.s32.totalorder %s192, %s193
      %p207 = scmp.eq.s32.totalorder %s33, 1
      %p208 = por %p206, %p207
      %p210 = scmp.ne.s32.totalorder %s193, %s209
      %p211 = scmp.eq.s32.totalorder %s33, 0
      %p212 = por %p210, %p211
      %p213 = scmp.le.s32.totalorder 1, %s27
      %p214 = scmp.lt.s32.totalorder %s27, 3
      %p215 = pnand %p213, %p214
      %p216 = pneg %p215
      // Predicated region
      $region9: #{tpu_custom_call.1} parent=5 // pred_check
        _
      $region10: #{tpu_custom_call.1} parent=5 // pred_check_branch
        %218 = sbr.rel (%p215) target = $region12
      $region11: #{tpu_custom_call.1} parent=5 // pred_region
        %s219 = ssub.s32 %s27, 1
        // Predicated region
        $region13: #{tpu_custom_call.1} parent=11 // pred_check
          %p220 = pneg %p74
        $region14: #{tpu_custom_call.1} parent=11 // pred_check_branch
          %222 = sbr.rel (%p220) target = $region16
        $region15: #{tpu_custom_call.1} parent=11 // pred_region
          %s224 = ssub.s32 16, 16
          %225 = vsyncadd [#allocation9], %s224
          %s227 = sshll.u32 [#allocation8], 4
          %s228 = int_to_ptr.vmem [resolvable:$true] %s227
          %230 = dma.hbm_to_vmem [thread:$0]  %s2, 16, %s228, [#allocation9]
        $region16: #{tpu_custom_call.1} parent=11 // pred_fallthru
          _
        // Predicated region
        $region17: #{tpu_custom_call.1} parent=11 // pred_check
          %p231 = pneg %p95
        $region18: #{tpu_custom_call.1} parent=11 // pred_check_branch
          %233 = sbr.rel (%p231) target = $region20
        $region19: #{tpu_custom_call.1} parent=11 // pred_region
          %s235 = ssub.s32 16, 16
          %236 = vsyncadd [#allocation9], %s235
          %s238 = sshll.u32 [#allocation10], 4
          %s239 = int_to_ptr.vmem [resolvable:$true] %s238
          %241 = dma.hbm_to_vmem [thread:$0]  %s3, 16, %s239, [#allocation9]
        $region20: #{tpu_custom_call.1} parent=11 // pred_fallthru
          _
        // Predicated region
        $region21: #{tpu_custom_call.1} parent=11 // pred_check
          %p242 = pneg %p116
        $region22: #{tpu_custom_call.1} parent=11 // pred_check_branch
          %244 = sbr.rel (%p242) target = $region24
        $region23: #{tpu_custom_call.1} parent=11 // pred_region
          %s246 = ssub.s32 256, 256
          %247 = vsyncadd [#allocation12], %s246
          %s248 = sshll.u32 [#allocation11], 4
          %s249 = int_to_ptr.vmem [resolvable:$true] %s248
          %254 = dma.hbm_to_vmem [thread:$0]  %s4, 256, %s249, [#allocation12], 128, 128, 8
        $region24: #{tpu_custom_call.1} parent=11 // pred_fallthru
          _
        // Predicated region
        $region25: #{tpu_custom_call.1} parent=11 // pred_check
          %p255 = pneg %p137
        $region26: #{tpu_custom_call.1} parent=11 // pred_check_branch
          %257 = sbr.rel (%p255) target = $region28
        $region27: #{tpu_custom_call.1} parent=11 // pred_region
          %s259 = ssub.s32 16, 16
          %260 = vsyncadd [#allocation12], %s259
          %s262 = sshll.u32 [#allocation13], 4
          %s263 = int_to_ptr.vmem [resolvable:$true] %s262
          %265 = dma.hbm_to_vmem [thread:$0]  %s5, 16, %s263, [#allocation12]
        $region28: #{tpu_custom_call.1} parent=11 // pred_fallthru
          _
        // Predicated region
        $region29: #{tpu_custom_call.1} parent=11 // pred_check
          %p266 = pneg %p158
        $region30: #{tpu_custom_call.1} parent=11 // pred_check_branch
          %268 = sbr.rel (%p266) target = $region32
        $region31: #{tpu_custom_call.1} parent=11 // pred_region
          %s270 = ssub.s32 1536, 1536
          %271 = vsyncadd [#allocation15], %s270
          %s272 = sshll.u32 [#allocation14], 4
          %s273 = int_to_ptr.vmem [resolvable:$true] %s272
          %278 = dma.hbm_to_vmem [thread:$0]  %s6, 1536, %s273, [#allocation15], 128, 128, 8
        $region32: #{tpu_custom_call.1} parent=11 // pred_fallthru
          _
        // Predicated region
        $region33: #{tpu_custom_call.1} parent=11 // pred_check
          %p279 = pneg %p179
        $region34: #{tpu_custom_call.1} parent=11 // pred_check_branch
          %281 = sbr.rel (%p279) target = $region36
        $region35: #{tpu_custom_call.1} parent=11 // pred_region
          %s283 = ssub.s32 16, 16
          %284 = vsyncadd [#allocation15], %s283
          %s286 = sshll.u32 [#allocation16], 4
          %s287 = int_to_ptr.vmem [resolvable:$true] %s286
          %289 = dma.hbm_to_vmem [thread:$0]  %s7, 16, %s287, [#allocation15]
        $region36: #{tpu_custom_call.1} parent=11 // pred_fallthru
          _
      $region12: #{tpu_custom_call.1} parent=5 // pred_fallthru
        _
      %p290 = scmp.lt.s32.totalorder %s27, 2
      // Predicated region
      $region37: #{tpu_custom_call.1} parent=5 // pred_check
        %p291 = pneg %p290
      $region38: #{tpu_custom_call.1} parent=5 // pred_check_branch
        %293 = sbr.rel (%p291) target = $region40
      $region39: #{tpu_custom_call.1} parent=5 // pred_region
        // Predicated region
        $region41: #{tpu_custom_call.1} parent=39 // pred_check
          %p294 = pneg %p47
        $region42: #{tpu_custom_call.1} parent=39 // pred_check_branch
          %296 = sbr.rel (%p294) target = $region44
        $region43: #{tpu_custom_call.1} parent=39 // pred_region
          %s297 = sand.u32 %s37, 1
          %s298 = scalar_lea.sflag [#allocation6], %s297
          %s299 = sand.u32 %s37, 1
          %s300 = smul.addr %s299, 8
          %s301 = scalar_lea.vmem [#allocation5], %s300
          %s303 = ssub.s32 128, 128
          %304 = vsyncadd %s298, %s303
          %s305 = smul.addr %s27, 128
          %s306 = scalar_lea.hbm %s1, %s305
          %s308 = sshll.u32 %s301, 4
          %s309 = int_to_ptr.vmem [resolvable:$true] %s308
          %311 = dma.hbm_to_vmem [thread:$0]  %s306, 128, %s309, %s298
        $region44: #{tpu_custom_call.1} parent=39 // pred_fallthru
          _
      $region40: #{tpu_custom_call.1} parent=5 // pred_fallthru
        _
      %p312 = scmp.le.s32.totalorder 1, %s27
      %p313 = scmp.lt.s32.totalorder %s27, 3
      %p314 = pnand %p312, %p313
      %p315 = pneg %p314
      // Predicated region
      $region45: #{tpu_custom_call.1} parent=5 // pred_check
        _
      $region46: #{tpu_custom_call.1} parent=5 // pred_check_branch
        %317 = sbr.rel (%p314) target = $region48
      $region47: #{tpu_custom_call.1} parent=5 // pred_region
        %s318 = ssub.s32 %s27, 1
        %s319 = sand.u32 %s40, 1
        %s320 = scalar_lea.sflag [#allocation6], %s319
        %s321 = sand.u32 %s40, 1
        %s322 = smul.addr %s321, 8
        %s323 = scalar_lea.vmem [#allocation5], %s322
        // Predicated region
        $region49: #{tpu_custom_call.1} parent=47 // pred_check
          %p324 = pneg %p53
        $region50: #{tpu_custom_call.1} parent=47 // pred_check_branch
          %326 = sbr.rel (%p324) target = $region52
        $region51: #{tpu_custom_call.1} parent=47 // pred_region
          %327 = dma.done %s320, 128
        $region52: #{tpu_custom_call.1} parent=47 // pred_fallthru
          _
        // Predicated region
        $region53: #{tpu_custom_call.1} parent=47 // pred_check
          %p328 = pneg %p74
        $region54: #{tpu_custom_call.1} parent=47 // pred_check_branch
          %330 = sbr.rel (%p328) target = $region56
        $region55: #{tpu_custom_call.1} parent=47 // pred_region
          %331 = dma.done [#allocation9], 16
        $region56: #{tpu_custom_call.1} parent=47 // pred_fallthru
          _
        // Predicated region
        $region57: #{tpu_custom_call.1} parent=47 // pred_check
          %p332 = pneg %p95
        $region58: #{tpu_custom_call.1} parent=47 // pred_check_branch
          %334 = sbr.rel (%p332) target = $region60
        $region59: #{tpu_custom_call.1} parent=47 // pred_region
          %335 = dma.done [#allocation9], 16
        $region60: #{tpu_custom_call.1} parent=47 // pred_fallthru
          _
        // Predicated region
        $region61: #{tpu_custom_call.1} parent=47 // pred_check
          %p336 = pneg %p116
        $region62: #{tpu_custom_call.1} parent=47 // pred_check_branch
          %338 = sbr.rel (%p336) target = $region64
        $region63: #{tpu_custom_call.1} parent=47 // pred_region
          %339 = dma.done [#allocation12], 256
        $region64: #{tpu_custom_call.1} parent=47 // pred_fallthru
          _
        // Predicated region
        $region65: #{tpu_custom_call.1} parent=47 // pred_check
          %p340 = pneg %p137
        $region66: #{tpu_custom_call.1} parent=47 // pred_check_branch
          %342 = sbr.rel (%p340) target = $region68
        $region67: #{tpu_custom_call.1} parent=47 // pred_region
          %343 = dma.done [#allocation12], 16
        $region68: #{tpu_custom_call.1} parent=47 // pred_fallthru
          _
        // Predicated region
        $region69: #{tpu_custom_call.1} parent=47 // pred_check
          %p344 = pneg %p158
        $region70: #{tpu_custom_call.1} parent=47 // pred_check_branch
          %346 = sbr.rel (%p344) target = $region72
        $region71: #{tpu_custom_call.1} parent=47 // pred_region
          %347 = dma.done [#allocation15], 1536
        $region72: #{tpu_custom_call.1} parent=47 // pred_fallthru
          _
        // Predicated region
        $region73: #{tpu_custom_call.1} parent=47 // pred_check
          %p348 = pneg %p179
        $region74: #{tpu_custom_call.1} parent=47 // pred_check_branch
          %350 = sbr.rel (%p348) target = $region76
        $region75: #{tpu_custom_call.1} parent=47 // pred_region
          %351 = dma.done [#allocation15], 16
        $region76: #{tpu_custom_call.1} parent=47 // pred_fallthru
          _
        %s352 = sand.u32 %s40, 1
        %s353 = scalar_lea.sflag [#allocation6], %s352
        %s354 = sand.u32 %s40, 1
        %s355 = smul.addr %s354, 8
        %s356 = scalar_lea.vmem [#allocation5], %s355
        %p357 = pneg %p53
        %p358 = pneg %p50
        %p359 = pneg %p74
        %p360 = pneg %p71
        %p361 = pneg %p95
        %p362 = pneg %p92
        %p363 = pneg %p116
        %p364 = pneg %p113
        %p365 = pneg %p137
        %p366 = pneg %p134
        %p367 = pneg %p158
        %p368 = pneg %p155
        %p369 = pneg %p179
        %p370 = pneg %p176
        %p371 = pneg %p205
        %p372 = pneg %p202
        %s373 = sand.u32 %s192, 1
        %s374 = scalar_lea.sflag [#allocation7], %s373
        %s375 = sand.u32 %s192, 1
        %s376 = smul.addr %s375, 8
        %s377 = scalar_lea.vmem [#allocation17], %s376
        %s378 = sld [smem:[#allocation4 + %s32]]
        %v379 = vld [vmem:[%s323] sm:$0xff]
        %v380 = vld [vmem:[#allocation8] sm:$0x1]
        %v381 = vld [vmem:[#allocation10] sm:$0x1]
        %vm382 = vcmask 130048
        %v383 = vsel %vm382, %v379, 0.0
        %384 = vadd.xlane.f32.xlu0 %v383
        %v385 = vpop.xlane.xlu0 %384
        %v386 = vrcp.pop 16.0
        %v387 = vmul.f32 %v385, %v386
        %v388 = vsub.f32 %v379, %v387
        %v389 = vmul.f32 %v388, %v388
        %v390 = vsel %vm382, %v389, 0.0
        %391 = vadd.xlane.f32.xlu0 %v390
        %v392 = vpop.xlane.xlu0 %391
        %v393 = vmul.f32 %v392, %v386
        %v394 = vadd.f32 %v393, 1e-05
        %v395 = vrsqrt.pop %v394
        %v396 = vmul.f32 %v388, %v395
        %v398 = vlaneseq
        %v399 = vshrl.u32 %v398, 7
        %v400 = vsub.s32 0, %v399
        %v401 = vrot.slane %v380, %v400
        %v403 = vmul.f32 %v396, %v401
        %v405 = vlaneseq
        %v406 = vshrl.u32 %v405, 7
        %v407 = vsub.s32 0, %v406
        %v408 = vrot.slane %v381, %v407
        %v410 = vadd.f32 %v403, %v408
        %v411 = vld [vmem:[#allocation11] sm:$0xff]
        %v412 = vld [vmem:[#allocation11 + $0x8] sm:$0xff]
        %v413 = vld [vmem:[#allocation13] sm:$0x1]
        %v415 = vlaneseq
        %v416 = vshrl.u32 %v415, 7
        %v417 = vsub.s32 0, %v416
        %v418 = vrot.slane %v413, %v417
        %v421 = vsel %vm382, %v410, 0
        %423 = vmatprep.subr.mxu0 0.0
        %424 = vmatpush1.msra.mxu0 %v411
        %425 = vmatprep.subr.mxu0 0.0
        %426 = vmatpush1.msra.mxu0 %v412
        %427 = vmatprep.subr.mxu0 0.0
        %428 = vmatpush1.msra.mxu0 0.0
        %429 = vmatprep.subr.mxu0 0.0
        %430 = vmatpush1.msra.mxu0 0.0
        %431 = vmatprep.subr.mxu0 0.0
        %432 = vmatpush1.msra.mxu0 0.0
        %433 = vmatprep.subr.mxu0 0.0
        %434 = vmatpush1.msra.mxu0 0.0
        %435 = vmatprep.subr.mxu0 0.0
        %436 = vmatpush1.msra.mxu0 0.0
        %437 = vmatprep.subr.mxu0 0.0
        %438 = vmatpush1.msra.mxu0 0.0
        %439 = vmatprep.subr.mxu0 0.0
        %440 = vmatpush1.msra.mxu0 0.0
        %441 = vmatprep.subr.mxu0 0.0
        %442 = vmatpush1.msra.mxu0 0.0
        %443 = vmatprep.subr.mxu0 0.0
        %444 = vmatpush1.msra.mxu0 0.0
        %445 = vmatprep.subr.mxu0 0.0
        %446 = vmatpush1.msra.mxu0 0.0
        %447 = vmatprep.subr.mxu0 0.0
        %448 = vmatpush1.msra.mxu0 0.0
        %449 = vmatprep.subr.mxu0 0.0
        %450 = vmatpush1.msra.mxu0 0.0
        %451 = vmatprep.subr.mxu0 0.0
        %452 = vmatpush1.msra.mxu0 0.0
        %453 = vmatprep.subr.mxu0 0.0
        %454 = vmatpush1.msra.mxu0 0.0
        %455 = vmatprep.subr.mxu0 0.0
        %456 = vmatpush1.msra.mxu0 0.0
        %457 = vmatprep.subr.mxu0 0.0
        %458 = vmatpush1.msra.mxu0 0.0
        %459 = vmatprep.subr.mxu0 0.0
        %460 = vmatpush1.msra.mxu0 0.0
        %461 = vmatprep.subr.mxu0 0.0
        %462 = vmatpush1.msra.mxu0 0.0
        %463 = vmatprep.subr.mxu0 0.0
        %464 = vmatpush1.msra.mxu0 0.0
        %465 = vmatprep.subr.mxu0 0.0
        %466 = vmatpush1.msra.mxu0 0.0
        %467 = vmatprep.subr.mxu0 0.0
        %468 = vmatpush1.msra.mxu0 0.0
        %469 = vmatprep.subr.mxu0 0.0
        %470 = vmatpush1.msra.mxu0 0.0
        %471 = vmatprep.subr.mxu0 0.0
        %472 = vmatpush1.msra.mxu0 0.0
        %473 = vmatprep.subr.mxu0 0.0
        %474 = vmatpush1.msra.mxu0 0.0
        %475 = vmatprep.subr.mxu0 0.0
        %476 = vmatpush1.msra.mxu0 0.0
        %477 = vmatprep.subr.mxu0 0.0
        %478 = vmatpush1.msra.mxu0 0.0
        %479 = vmatprep.subr.mxu0 0.0
        %480 = vmatpush1.msra.mxu0 0.0
        %481 = vmatprep.subr.mxu0 0.0
        %482 = vmatpush1.msra.mxu0 0.0
        %483 = vmatprep.subr.mxu0 0.0
        %484 = vmatpush1.msra.mxu0 0.0
        %485 = vmatprep.subr.mxu0 0.0
        %486 = vmatpush1.msra.mxu0 0.0
        %487 = vmatprep.mubr.f32.mxu0 0.0
        %488 = vmatmul.mubr.f32.gmra.mrb[0].mxu0 %v421
        %v489 = vpop.f32.mrb[0].mxu0
        %v490 = vadd.f32 %v418, %v489
        %v491 = vpop.f32.mrb[0].mxu0
        %492 = vdwg.mxu0
        %v493 = vlaneseq
        %v494 = vshrl.u32 %v493, 7
        %v495 = vstv %s378
        %vm496 = vcmp.lt.s32.totalorder %v494, %v495
        %v497 = vsel %vm496, 1, 0
        %vm498 = vcmp.eq.s32.totalorder %v497, 1
        %v499 = vsel %vm498, %v490, 0.0
        %vm500 = vcmask 253952
        %501 = vst.msk [vmem:[#allocation2] sm:$0x1] %vm500, 0.0
        %502 = vst.msk [vmem:[#allocation2 + $0x9] sm:$0x1] %vm500, 0.0
        %vm503 = vcmask 261120
        %504 = vst.msk [vmem:[#allocation2 + $0x1] sm:$0xff] %vm503, %v499
        %v505 = vld [vmem:[#allocation2] sm:$0xff]
        %v506 = vld [vmem:[#allocation2 + $0x1] sm:$0xff]
        %v507 = vld [vmem:[#allocation2 + $0x2] sm:$0xff]
        %509 = vrot.lane.b32.xlu0 %v506, 16
        %v510 = vpop.permute.xlu0 %509
        %513 = vrot.lane.b32.xlu0 %v507, 32
        %v514 = vpop.permute.xlu0 %513
        %v516 = vsel %vm382, %v505, %v510
        %v517 = vsel %vm503, %v516, %v514
        %v518 = vld [vmem:[#allocation14] sm:$0xff]
        %v519 = vld [vmem:[#allocation14 + $0x8] sm:$0xff]
        %v520 = vld [vmem:[#allocation14 + $0x10] sm:$0xff]
        %v521 = vld [vmem:[#allocation14 + $0x18] sm:$0xff]
        %v522 = vld [vmem:[#allocation14 + $0x20] sm:$0xff]
        %v523 = vld [vmem:[#allocation14 + $0x28] sm:$0xff]
        %vm524 = vcmask 392192
        %v526 = vsel %vm524, %v517, 0
        %528 = vmatprep.subr.mxu0 0.0
        %529 = vmatpush1.msra.mxu0 %v518
        %530 = vmatprep.subr.mxu0 0.0
        %531 = vmatpush1.msra.mxu0 %v519
        %532 = vmatprep.subr.mxu0 0.0
        %533 = vmatpush1.msra.mxu0 %v520
        %534 = vmatprep.subr.mxu0 0.0
        %535 = vmatpush1.msra.mxu0 %v521
        %536 = vmatprep.subr.mxu0 0.0
        %537 = vmatpush1.msra.mxu0 %v522
        %538 = vmatprep.subr.mxu0 0.0
        %539 = vmatpush1.msra.mxu0 %v523
        %540 = vmatprep.subr.mxu0 0.0
        %541 = vmatpush1.msra.mxu0 0.0
        %542 = vmatprep.subr.mxu0 0.0
        %543 = vmatpush1.msra.mxu0 0.0
        %544 = vmatprep.subr.mxu0 0.0
        %545 = vmatpush1.msra.mxu0 0.0
        %546 = vmatprep.subr.mxu0 0.0
        %547 = vmatpush1.msra.mxu0 0.0
        %548 = vmatprep.subr.mxu0 0.0
        %549 = vmatpush1.msra.mxu0 0.0
        %550 = vmatprep.subr.mxu0 0.0
        %551 = vmatpush1.msra.mxu0 0.0
        %552 = vmatprep.subr.mxu0 0.0
        %553 = vmatpush1.msra.mxu0 0.0
        %554 = vmatprep.subr.mxu0 0.0
        %555 = vmatpush1.msra.mxu0 0.0
        %556 = vmatprep.subr.mxu0 0.0
        %557 = vmatpush1.msra.mxu0 0.0
        %558 = vmatprep.subr.mxu0 0.0
        %559 = vmatpush1.msra.mxu0 0.0
        %560 = vmatprep.subr.mxu0 0.0
        %561 = vmatpush1.msra.mxu0 0.0
        %562 = vmatprep.subr.mxu0 0.0
        %563 = vmatpush1.msra.mxu0 0.0
        %564 = vmatprep.subr.mxu0 0.0
        %565 = vmatpush1.msra.mxu0 0.0
        %566 = vmatprep.subr.mxu0 0.0
        %567 = vmatpush1.msra.mxu0 0.0
        %568 = vmatprep.subr.mxu0 0.0
        %569 = vmatpush1.msra.mxu0 0.0
        %570 = vmatprep.subr.mxu0 0.0
        %571 = vmatpush1.msra.mxu0 0.0
        %572 = vmatprep.subr.mxu0 0.0
        %573 = vmatpush1.msra.mxu0 0.0
        %574 = vmatprep.subr.mxu0 0.0
        %575 = vmatpush1.msra.mxu0 0.0
        %576 = vmatprep.subr.mxu0 0.0
        %577 = vmatpush1.msra.mxu0 0.0
        %578 = vmatprep.subr.mxu0 0.0
        %579 = vmatpush1.msra.mxu0 0.0
        %580 = vmatprep.subr.mxu0 0.0
        %581 = vmatpush1.msra.mxu0 0.0
        %582 = vmatprep.subr.mxu0 0.0
        %583 = vmatpush1.msra.mxu0 0.0
        %584 = vmatprep.subr.mxu0 0.0
        %585 = vmatpush1.msra.mxu0 0.0
        %586 = vmatprep.subr.mxu0 0.0
        %587 = vmatpush1.msra.mxu0 0.0
        %588 = vmatprep.subr.mxu0 0.0
        %589 = vmatpush1.msra.mxu0 0.0
        %590 = vmatprep.subr.mxu0 0.0
        %591 = vmatpush1.msra.mxu0 0.0
        %592 = vmatprep.mubr.f32.mxu0 0.0
        %593 = vmatmul.mubr.f32.gmra.mrb[0].mxu0 %v526
        %v594 = vpop.f32.mrb[0].mxu0
        %v595 = vadd.f32 0.0, %v594
        %v596 = vpop.f32.mrb[0].mxu0
        %597 = vdwg.mxu0
        %599 = vrot.lane.b32.xlu0 %v505, 112
        %v600 = vpop.permute.xlu0 %599
        %602 = vrot.lane.b32.xlu0 %v507, 16
        %v603 = vpop.permute.xlu0 %602
        %v605 = vsel %vm382, %v600, %v506
        %v606 = vsel %vm503, %v605, %v603
        %s607 = scalar_lea.vmem [#allocation14], 48
        %v608 = vld [vmem:[%s607] sm:$0xff]
        %v609 = vld [vmem:[%s607 + $0x8] sm:$0xff]
        %v610 = vld [vmem:[%s607 + $0x10] sm:$0xff]
        %v611 = vld [vmem:[%s607 + $0x18] sm:$0xff]
        %v612 = vld [vmem:[%s607 + $0x20] sm:$0xff]
        %v613 = vld [vmem:[%s607 + $0x28] sm:$0xff]
        %v615 = vsel %vm524, %v606, 0
        %617 = vmatprep.subr.mxu0 0.0
        %618 = vmatpush1.msra.mxu0 %v608
        %619 = vmatprep.subr.mxu0 0.0
        %620 = vmatpush1.msra.mxu0 %v609
        %621 = vmatprep.subr.mxu0 0.0
        %622 = vmatpush1.msra.mxu0 %v610
        %623 = vmatprep.subr.mxu0 0.0
        %624 = vmatpush1.msra.mxu0 %v611
        %625 = vmatprep.subr.mxu0 0.0
        %626 = vmatpush1.msra.mxu0 %v612
        %627 = vmatprep.subr.mxu0 0.0
        %628 = vmatpush1.msra.mxu0 %v613
        %629 = vmatprep.subr.mxu0 0.0
        %630 = vmatpush1.msra.mxu0 0.0
        %631 = vmatprep.subr.mxu0 0.0
        %632 = vmatpush1.msra.mxu0 0.0
        %633 = vmatprep.subr.mxu0 0.0
        %634 = vmatpush1.msra.mxu0 0.0
        %635 = vmatprep.subr.mxu0 0.0
        %636 = vmatpush1.msra.mxu0 0.0
        %637 = vmatprep.subr.mxu0 0.0
        %638 = vmatpush1.msra.mxu0 0.0
        %639 = vmatprep.subr.mxu0 0.0
        %640 = vmatpush1.msra.mxu0 0.0
        %641 = vmatprep.subr.mxu0 0.0
        %642 = vmatpush1.msra.mxu0 0.0
        %643 = vmatprep.subr.mxu0 0.0
        %644 = vmatpush1.msra.mxu0 0.0
        %645 = vmatprep.subr.mxu0 0.0
        %646 = vmatpush1.msra.mxu0 0.0
        %647 = vmatprep.subr.mxu0 0.0
        %648 = vmatpush1.msra.mxu0 0.0
        %649 = vmatprep.subr.mxu0 0.0
        %650 = vmatpush1.msra.mxu0 0.0
        %651 = vmatprep.subr.mxu0 0.0
        %652 = vmatpush1.msra.mxu0 0.0
        %653 = vmatprep.subr.mxu0 0.0
        %654 = vmatpush1.msra.mxu0 0.0
        %655 = vmatprep.subr.mxu0 0.0
        %656 = vmatpush1.msra.mxu0 0.0
        %657 = vmatprep.subr.mxu0 0.0
        %658 = vmatpush1.msra.mxu0 0.0
        %659 = vmatprep.subr.mxu0 0.0
        %660 = vmatpush1.msra.mxu0 0.0
        %661 = vmatprep.subr.mxu0 0.0
        %662 = vmatpush1.msra.mxu0 0.0
        %663 = vmatprep.subr.mxu0 0.0
        %664 = vmatpush1.msra.mxu0 0.0
        %665 = vmatprep.subr.mxu0 0.0
        %666 = vmatpush1.msra.mxu0 0.0
        %667 = vmatprep.subr.mxu0 0.0
        %668 = vmatpush1.msra.mxu0 0.0
        %669 = vmatprep.subr.mxu0 0.0
        %670 = vmatpush1.msra.mxu0 0.0
        %671 = vmatprep.subr.mxu0 0.0
        %672 = vmatpush1.msra.mxu0 0.0
        %673 = vmatprep.subr.mxu0 0.0
        %674 = vmatpush1.msra.mxu0 0.0
        %675 = vmatprep.subr.mxu0 0.0
        %676 = vmatpush1.msra.mxu0 0.0
        %677 = vmatprep.subr.mxu0 0.0
        %678 = vmatpush1.msra.mxu0 0.0
        %679 = vmatprep.subr.mxu0 0.0
        %680 = vmatpush1.msra.mxu0 0.0
        %681 = vmatprep.mubr.f32.mxu0 0.0
        %682 = vmatmul.mubr.f32.gmra.mrb[0].mxu0 %v615
        %v683 = vpop.f32.mrb[0].mxu0
        %v684 = vadd.f32 0.0, %v683
        %v685 = vpop.f32.mrb[0].mxu0
        %686 = vdwg.mxu0
        %688 = vrot.lane.b32.xlu0 %v684, 16
        %v689 = vpop.permute.xlu0 %688
        %v691 = vsel %vm382, %v595, %v689
        %v692 = vld [vmem:[#allocation16] sm:$0x1]
        %v694 = vlaneseq
        %v695 = vshrl.u32 %v694, 7
        %v696 = vsub.s32 0, %v695
        %v697 = vrot.slane %v692, %v696
        %v699 = vadd.f32 %v691, %v697
        %v700 = vmul.f32 %v699, 0.5
        %v701 = vmul.f32 %v699, 0.044715
        %v702 = vmul.f32 %v701, %v699
        %v703 = vmul.f32 %v702, %v699
        %v704 = vadd.f32 %v699, %v703
        %v705 = vmul.f32 %v704, 0.7978846
        %v706 = vtanh.pop %v705
        %v707 = vadd.f32 %v706, 1.0
        %v708 = vmul.f32 %v700, %v707
        %v709 = vadd.f32 %v499, %v708
        %710 = vst.msk [vmem:[%s377] sm:$0xff] %vm503, %v709
        %s711 = sand.u32 %s192, 1
        %s712 = scalar_lea.sflag [#allocation7], %s711
        %s713 = sand.u32 %s192, 1
        %s714 = smul.addr %s713, 8
        %s715 = scalar_lea.vmem [#allocation17], %s714
        // Predicated region
        $region77: #{tpu_custom_call.1} parent=47 // pred_check
          %p716 = pneg %p202
        $region78: #{tpu_custom_call.1} parent=47 // pred_check_branch
          %718 = sbr.rel (%p716) target = $region80
        $region79: #{tpu_custom_call.1} parent=47 // pred_region
          %s720 = ssub.s32 128, 128
          %721 = vsyncadd %s712, %s720
          %s722 = smul.addr %s32, 128
          %s723 = scalar_lea.hbm %s8, %s722
          %s725 = sshll.u32 %s715, 4
          %s726 = int_to_ptr.vmem [resolvable:$true] %s725
          %728 = dma.vmem_to_hbm [thread:$0]  %s726, 128, %s723, %s712
        $region80: #{tpu_custom_call.1} parent=47 // pred_fallthru
          _
      $region48: #{tpu_custom_call.1} parent=5 // pred_fallthru
        _
      %p729 = scmp.le.s32.totalorder 2, %s27
      // Predicated region
      $region81: #{tpu_custom_call.1} parent=5 // pred_check
        %p730 = pneg %p729
      $region82: #{tpu_custom_call.1} parent=5 // pred_check_branch
        %732 = sbr.rel (%p730) target = $region84
      $region83: #{tpu_custom_call.1} parent=5 // pred_region
        %s733 = ssub.s32 %s27, 2
        // Predicated region
        $region85: #{tpu_custom_call.1} parent=83 // pred_check
          %p734 = pneg %p208
        $region86: #{tpu_custom_call.1} parent=83 // pred_check_branch
          %736 = sbr.rel (%p734) target = $region88
        $region87: #{tpu_custom_call.1} parent=83 // pred_region
          %s737 = sand.u32 %s193, 1
          %s738 = scalar_lea.sflag [#allocation7], %s737
          %s739 = sand.u32 %s193, 1
          %s740 = smul.addr %s739, 8
          %s741 = scalar_lea.vmem [#allocation17], %s740
          %742 = dma.done %s738, 128
        $region88: #{tpu_custom_call.1} parent=83 // pred_fallthru
          _
      $region84: #{tpu_custom_call.1} parent=5 // pred_fallthru
        _
    $region6: #{tpu_custom_call.1} parent=1 // loop_footer
      %s31 = sadd.s32 1, %s27
    $region7: #{tpu_custom_call.1} parent=1 // loop_footer_branch
      %26 = sbr.rel target = $region3
    $region8: #{tpu_custom_call.1} parent=1 // loop_exit
      _
    %743 = vsyncpa [#allocation6], 1
    %s744 = scalar_lea.sflag [#allocation6], 1
    %745 = vsyncpa %s744, 1
    %746 = vsyncpa [#allocation9], 1
    %747 = vsyncpa [#allocation12], 1
    %748 = vsyncpa [#allocation15], 1
    %749 = vsyncpa [#allocation7], 1
    %s750 = scalar_lea.sflag [#allocation7], 1
    %751 = vsyncpa %s750, 1

</llo_original>
